<compile_context>
chip_gen: v7x
topology: tpu7x:2x2x1
jax: 0.10.0
libtpu: 0.0.40
codegen_flags: <defaults>
</compile_context>

<pallas_src>
import functools

import jax
import jax.numpy as jnp
import numpy as np
from jax.experimental import pallas as pl
from jax.experimental.pallas import tpu as pltpu


def _batch_tile(n_batch, n_feat, itemsize, target_bytes=512 * 1024):
    """Rows per grid step: full batch if small, else a multiple of 8 sized so
    one input block is ~<= target_bytes (keeps VMEM use safe on all gens)."""
    if n_batch <= 8:
        return int(n_batch)
    rows = max(8, (target_bytes // max(1, n_feat * itemsize)) // 8 * 8)
    return int(min(rows, (n_batch + 7) // 8 * 8))


def _log_softmax_lanes(x):
    m = jnp.max(x, axis=1, keepdims=True)
    return (x - m) - jnp.log(jnp.sum(jnp.exp(x - m), axis=1, keepdims=True))


# ---------------------------------------------------------------------------
# Attention-aware KL term for one (teacher_layer, student_layer) pair.
# ---------------------------------------------------------------------------
def _at_kl_kernel(t_ref, s_ref, out_ref, acc_ref, *, n_batch, batch_tile):
    i = pl.program_id(0)

    @pl.when(i == 0)
    def _init():
        acc_ref[...] = jnp.zeros_like(acc_ref)

    t = t_ref[...].astype(jnp.float32)          # (TB, N)
    s = s_ref[...].astype(jnp.float32)

    # F.normalize(p=1, dim=1), eps = 1e-12 (torch default)
    t = t / jnp.maximum(jnp.sum(jnp.abs(t), axis=1, keepdims=True), 1e-12)
    s = s / jnp.maximum(jnp.sum(jnp.abs(s), axis=1, keepdims=True), 1e-12)

    lt = _log_softmax_lanes(t)                  # log_softmax(teacher), dim=1
    ls = _log_softmax_lanes(s)                  # log_softmax(student), dim=1

    # KLDivLoss(log_target=True): pointwise exp(lt) * (lt - ls), summed per row.
    kl_rows = jnp.sum(jnp.exp(lt) * (lt - ls), axis=1, keepdims=True)   # (TB,1)

    # Mask rows past the real batch (tail tile).
    rid = i * batch_tile + jax.lax.broadcasted_iota(jnp.int32, kl_rows.shape, 0)
    kl_rows = jnp.where(rid < n_batch, kl_rows, 0.0)

    acc_ref[...] += jnp.sum(kl_rows, axis=0, keepdims=True)

    @pl.when(i == pl.num_programs(0) - 1)
    def _finalize():
        out_ref[0, 0] = acc_ref[0, 0] / jnp.float32(n_batch)   # 'batchmean'


def _attention_kl(t_layer, s_layer):
    assert t_layer.shape[0] == s_layer.shape[0]
    n_batch = t_layer.shape[0]
    t2d = t_layer.reshape(n_batch, -1)          # flatten(start_dim=1)
    s2d = s_layer.reshape(n_batch, -1)
    assert t2d.shape == s2d.shape
    n_feat = t2d.shape[1]

    tb = _batch_tile(n_batch, n_feat, t2d.dtype.itemsize)
    grid = (pl.cdiv(n_batch, tb),)

    kernel = functools.partial(_at_kl_kernel, n_batch=n_batch, batch_tile=tb)
    out = pl.pallas_call(
        kernel,
        out_shape=jax.ShapeDtypeStruct((1, 1), jnp.float32),
        grid=grid,
        in_specs=[
            pl.BlockSpec((tb, n_feat), lambda i: (i, 0)),
            pl.BlockSpec((tb, n_feat), lambda i: (i, 0)),
        ],
        out_specs=pl.BlockSpec((1, 1), lambda i: (0, 0),
                               memory_space=pltpu.MemorySpace.SMEM),
        scratch_shapes=[pltpu.VMEM((1, 1), jnp.float32)],
        compiler_params=pltpu.CompilerParams(
            dimension_semantics=("arbitrary",)),
    )(t2d, s2d)
    return out[0, 0]


# ---------------------------------------------------------------------------
# KDLoss: alpha * soft-label CE + (1 - alpha) * hard-label CE on the logits.
# ---------------------------------------------------------------------------
def _kd_ce_kernel(t_ref, s_ref, out_ref, acc_ref, *, n_batch, batch_tile, alpha):
    i = pl.program_id(0)

    @pl.when(i == 0)
    def _init():
        acc_ref[...] = jnp.zeros_like(acc_ref)

    t = t_ref[...].astype(jnp.float32)          # (TB, C) teacher logits
    s = s_ref[...].astype(jnp.float32)          # (TB, C) student logits

    ls = _log_softmax_lanes(s)                  # log_softmax(student)

    # Soft labels: softmax(teacher); CE = -sum_c p_c * log_softmax(student)_c
    tm = jnp.max(t, axis=1, keepdims=True)
    te = jnp.exp(t - tm)
    soft = te / jnp.sum(te, axis=1, keepdims=True)
    soft_rows = -jnp.sum(soft * ls, axis=1, keepdims=True)              # (TB,1)

    # Hard labels: argmax(teacher) (first max, matching torch.argmax)
    col = jax.lax.broadcasted_iota(jnp.int32, t.shape, 1)
    idx = jnp.min(jnp.where(t == tm, col, jnp.int32(t.shape[1])),
                  axis=1, keepdims=True)                                # (TB,1)
    hard_rows = -jnp.sum(jnp.where(col == idx, ls, 0.0),
                         axis=1, keepdims=True)                         # (TB,1)

    ce_rows = (jnp.float32(alpha) * soft_rows
               + jnp.float32(1.0 - alpha) * hard_rows)

    rid = i * batch_tile + jax.lax.broadcasted_iota(jnp.int32, ce_rows.shape, 0)
    ce_rows = jnp.where(rid < n_batch, ce_rows, 0.0)

    acc_ref[...] += jnp.sum(ce_rows, axis=0, keepdims=True)

    @pl.when(i == pl.num_programs(0) - 1)
    def _finalize():
        out_ref[0, 0] = acc_ref[0, 0] / jnp.float32(n_batch)   # CE 'mean'


def _kd_ce(teacher_out, student_out, alpha):
    assert teacher_out.shape == student_out.shape
    n_batch, n_classes = teacher_out.shape
    tb = _batch_tile(n_batch, n_classes, teacher_out.dtype.itemsize)
    grid = (pl.cdiv(n_batch, tb),)

    kernel = functools.partial(_kd_ce_kernel, n_batch=n_batch,
                               batch_tile=tb, alpha=float(alpha))
    out = pl.pallas_call(
        kernel,
        out_shape=jax.ShapeDtypeStruct((1, 1), jnp.float32),
        grid=grid,
        in_specs=[
            pl.BlockSpec((tb, n_classes), lambda i: (i, 0)),
            pl.BlockSpec((tb, n_classes), lambda i: (i, 0)),
        ],
        out_specs=pl.BlockSpec((1, 1), lambda i: (0, 0),
                               memory_space=pltpu.MemorySpace.SMEM),
        scratch_shapes=[pltpu.VMEM((1, 1), jnp.float32)],
        compiler_params=pltpu.CompilerParams(
            dimension_semantics=("arbitrary",)),
    )(teacher_out, student_out)
    return out[0, 0]


# ---------------------------------------------------------------------------
# Forward pass of KLAttentionAwareKDLoss.
# ---------------------------------------------------------------------------
def kl_attention_aware_kd_loss(teacher_out, student_out, teacher_layers,
                               student_layers, llambda=0.99, alpha=0.9):
    at_loss = jnp.float32(0.0)
    for t_layer, s_layer in zip(teacher_layers, student_layers):
        at_loss = at_loss + _attention_kl(t_layer, s_layer)
    ce_loss = _kd_ce(teacher_out, student_out, alpha=alpha)
    llam = jnp.float32(llambda)
    # Final weighted combine of a handful of scalars is done in plain jnp.
    return (1.0 - llam) * at_loss + llam * ce_loss


# ---------------------------------------------------------------------------
# Pure-JAX reference (mirrors the PyTorch module exactly) for the sanity check.
# ---------------------------------------------------------------------------
def _ref_loss(teacher_out, student_out, teacher_layers, student_layers,
              llambda=0.99, alpha=0.9):
    def log_softmax(x):
        m = jnp.max(x, axis=1, keepdims=True)
        return (x - m) - jnp.log(jnp.sum(jnp.exp(x - m), axis=1, keepdims=True))

    at = jnp.float32(0.0)
    for t, s in zip(teacher_layers, student_layers):
        b = t.shape[0]
        tf = t.reshape(b, -1)
        sf = s.reshape(b, -1)
        tf = tf / jnp.maximum(jnp.sum(jnp.abs(tf), axis=1, keepdims=True), 1e-12)
        sf = sf / jnp.maximum(jnp.sum(jnp.abs(sf), axis=1, keepdims=True), 1e-12)
        lt = log_softmax(tf)
        ls = log_softmax(sf)
        at = at + jnp.sum(jnp.exp(lt) * (lt - ls)) / b

    ls_out = log_softmax(student_out)
    soft = jax.nn.softmax(teacher_out, axis=1)
    soft_loss = jnp.mean(-jnp.sum(soft * ls_out, axis=1))
    hard = jnp.argmax(teacher_out, axis=1)
    hard_loss = jnp.mean(-jnp.take_along_axis(ls_out, hard[:, None], axis=1)[:, 0])
    ce = alpha * soft_loss + (1.0 - alpha) * hard_loss
    return (1.0 - llambda) * at + llambda * ce


if __name__ == "__main__":
    key = jax.random.PRNGKey(0)
    k = jax.random.split(key, 6)

    B, NUM_CLASSES = 2, 32
    teacher_out = jax.random.normal(k[0], (B, NUM_CLASSES), jnp.float32)
    student_out = jax.random.normal(k[1], (B, NUM_CLASSES), jnp.float32)
    teacher_layers = [
        jax.random.normal(k[2], (B, 4, 16, 16), jnp.float32),
        jax.random.normal(k[3], (B, 8, 8, 8), jnp.float32),
    ]
    student_layers = [
        jax.random.normal(k[4], (B, 4, 16, 16), jnp.float32),
        jax.random.normal(k[5], (B, 8, 8, 8), jnp.float32),
    ]

    loss = kl_attention_aware_kd_loss(
        teacher_out, student_out, teacher_layers, student_layers,
        llambda=0.99, alpha=0.9)
    loss = jax.block_until_ready(loss)

    ref = _ref_loss(teacher_out, student_out, teacher_layers, student_layers,
                    llambda=0.99, alpha=0.9)
    np.testing.assert_allclose(np.asarray(loss), np.asarray(ref),
                               rtol=1e-5, atol=1e-5)

    print("KERNEL_OK")
</pallas_src>

<mosaic_0001>
module attributes {stable_mosaic.version = 11 : i64} {
  func.func @_at_kl_kernel(%arg0: i32, %arg1: memref<2x1024xf32, #tpu.memory_space<vmem>>, %arg2: memref<2x1024xf32, #tpu.memory_space<vmem>>, %arg3: memref<1x1xf32, #tpu.memory_space<smem>>, %arg4: memref<1x1xf32, #tpu.memory_space<vmem>>) attributes {dimension_semantics = [#tpu.dimension_semantics<arbitrary>], iteration_bounds = array<i64: 1>, scalar_prefetch = 0 : i64, scratch_operands = 1 : i64, tpu.core_type = #tpu.core_type<tc>, window_params = [{transform_indices = @transform_0, window_bounds = array<i64: 2, 1024>}, {transform_indices = @transform_1, window_bounds = array<i64: 2, 1024>}, {transform_indices = @transform_2, window_bounds = array<i64: 1, 1>}]} {
    %c0_i32 = arith.constant 0 : i32
    %0 = arith.cmpi eq, %arg0, %c0_i32 : i32
    %1 = arith.extui %0 : i1 to i32
    %c0_i32_0 = arith.constant 0 : i32
    %2 = arith.cmpi ne, %1, %c0_i32_0 : i32
    scf.if %2 {
      %cst_21 = arith.constant 0.000000e+00 : f32
      %64 = vector.broadcast %cst_21 : f32 to vector<1x1xf32>
      %c0_22 = arith.constant 0 : index
      %c0_23 = arith.constant 0 : index
      %65 = vector.load %arg4[%c0_22, %c0_23] : memref<1x1xf32, #tpu.memory_space<vmem>>, vector<1x1xf32>
      tpu.vector_store %arg4[%c0_22, %c0_23], %64 {strides = array<i32>} : memref<1x1xf32, #tpu.memory_space<vmem>>, vector<1x1xf32>,
    } else {
    }
    %c0 = arith.constant 0 : index
    %c0_1 = arith.constant 0 : index
    %3 = vector.load %arg1[%c0, %c0_1] : memref<2x1024xf32, #tpu.memory_space<vmem>>, vector<2x1024xf32>
    %c0_2 = arith.constant 0 : index
    %c0_3 = arith.constant 0 : index
    %4 = vector.load %arg2[%c0_2, %c0_3] : memref<2x1024xf32, #tpu.memory_space<vmem>>, vector<2x1024xf32>
    %5 = math.absf %3 : vector<2x1024xf32>
    %cst = arith.constant dense<0.000000e+00> : vector<2xf32>
    %6 = vector.multi_reduction <add>, %5, %cst [1] : vector<2x1024xf32> to vector<2xf32>
    %7 = vector.shape_cast %6 : vector<2xf32> to vector<2x1xf32>
    %cst_4 = arith.constant 9.99999996E-13 : f32
    %8 = vector.broadcast %cst_4 : f32 to vector<2x1xf32>
    %9 = arith.maximumf %7, %8 : vector<2x1xf32>
    %10 = vector.broadcast %9 : vector<2x1xf32> to vector<2x1024xf32>
    %11 = arith.divf %3, %10 : vector<2x1024xf32>
    %12 = math.absf %4 : vector<2x1024xf32>
    %cst_5 = arith.constant dense<0.000000e+00> : vector<2xf32>
    %13 = vector.multi_reduction <add>, %12, %cst_5 [1] : vector<2x1024xf32> to vector<2xf32>
    %14 = vector.shape_cast %13 : vector<2xf32> to vector<2x1xf32>
    %cst_6 = arith.constant 9.99999996E-13 : f32
    %15 = vector.broadcast %cst_6 : f32 to vector<2x1xf32>
    %16 = arith.maximumf %14, %15 : vector<2x1xf32>
    %17 = vector.broadcast %16 : vector<2x1xf32> to vector<2x1024xf32>
    %18 = arith.divf %4, %17 : vector<2x1024xf32>
    %cst_7 = arith.constant dense<0xFF800000> : vector<2xf32>
    %19 = vector.multi_reduction <maximumf>, %11, %cst_7 [1] : vector<2x1024xf32> to vector<2xf32>
    %20 = vector.shape_cast %19 : vector<2xf32> to vector<2x1xf32>
    %21 = vector.broadcast %20 : vector<2x1xf32> to vector<2x1024xf32>
    %22 = arith.subf %11, %21 : vector<2x1024xf32>
    %23 = vector.broadcast %20 : vector<2x1xf32> to vector<2x1024xf32>
    %24 = arith.subf %11, %23 : vector<2x1024xf32>
    %25 = math.exp %24 : vector<2x1024xf32>
    %cst_8 = arith.constant dense<0.000000e+00> : vector<2xf32>
    %26 = vector.multi_reduction <add>, %25, %cst_8 [1] : vector<2x1024xf32> to vector<2xf32>
    %27 = vector.shape_cast %26 : vector<2xf32> to vector<2x1xf32>
    %28 = math.log %27 : vector<2x1xf32>
    %29 = vector.broadcast %28 : vector<2x1xf32> to vector<2x1024xf32>
    %30 = arith.subf %22, %29 : vector<2x1024xf32>
    %cst_9 = arith.constant dense<0xFF800000> : vector<2xf32>
    %31 = vector.multi_reduction <maximumf>, %18, %cst_9 [1] : vector<2x1024xf32> to vector<2xf32>
    %32 = vector.shape_cast %31 : vector<2xf32> to vector<2x1xf32>
    %33 = vector.broadcast %32 : vector<2x1xf32> to vector<2x1024xf32>
    %34 = arith.subf %18, %33 : vector<2x1024xf32>
    %35 = vector.broadcast %32 : vector<2x1xf32> to vector<2x1024xf32>
    %36 = arith.subf %18, %35 : vector<2x1024xf32>
    %37 = math.exp %36 : vector<2x1024xf32>
    %cst_10 = arith.constant dense<0.000000e+00> : vector<2xf32>
    %38 = vector.multi_reduction <add>, %37, %cst_10 [1] : vector<2x1024xf32> to vector<2xf32>
    %39 = vector.shape_cast %38 : vector<2xf32> to vector<2x1xf32>
    %40 = math.log %39 : vector<2x1xf32>
    %41 = vector.broadcast %40 : vector<2x1xf32> to vector<2x1024xf32>
    %42 = arith.subf %34, %41 : vector<2x1024xf32>
    %43 = math.exp %30 : vector<2x1024xf32>
    %44 = arith.subf %30, %42 : vector<2x1024xf32>
    %45 = arith.mulf %43, %44 : vector<2x1024xf32>
    %cst_11 = arith.constant dense<0.000000e+00> : vector<2xf32>
    %46 = vector.multi_reduction <add>, %45, %cst_11 [1] : vector<2x1024xf32> to vector<2xf32>
    %47 = vector.shape_cast %46 : vector<2xf32> to vector<2x1xf32>
    %c2_i32 = arith.constant 2 : i32
    %48 = arith.muli %arg0, %c2_i32 : i32
    %49 = tpu.iota {dimensions = array<i32: 0>} : vector<2x1xi32>
    %50 = vector.broadcast %48 : i32 to vector<2x1xi32>
    %51 = arith.addi %50, %49 : vector<2x1xi32>
    %c2_i32_12 = arith.constant 2 : i32
    %52 = vector.broadcast %c2_i32_12 : i32 to vector<2x1xi32>
    %53 = arith.cmpi slt, %51, %52 : vector<2x1xi32>
    %cst_13 = arith.constant 0.000000e+00 : f32
    %54 = vector.broadcast %cst_13 : f32 to vector<2x1xf32>
    %55 = arith.select %53, %47, %54 : vector<2x1xi1>, vector<2x1xf32>
    %c0_14 = arith.constant 0 : index
    %c0_15 = arith.constant 0 : index
    %56 = vector.load %arg4[%c0_14, %c0_15] : memref<1x1xf32, #tpu.memory_space<vmem>>, vector<1x1xf32>
    %cst_16 = arith.constant dense<0.000000e+00> : vector<1xf32>
    %57 = vector.multi_reduction <add>, %55, %cst_16 [0] : vector<2x1xf32> to vector<1xf32>
    %58 = vector.shape_cast %57 : vector<1xf32> to vector<1x1xf32>
    %59 = arith.addf %56, %58 : vector<1x1xf32>
    %c0_17 = arith.constant 0 : index
    %c0_18 = arith.constant 0 : index
    %60 = vector.load %arg4[%c0_17, %c0_18] : memref<1x1xf32, #tpu.memory_space<vmem>>, vector<1x1xf32>
    tpu.vector_store %arg4[%c0_17, %c0_18], %59 {strides = array<i32>} : memref<1x1xf32, #tpu.memory_space<vmem>>, vector<1x1xf32>,
    %c0_i32_19 = arith.constant 0 : i32
    %61 = arith.cmpi eq, %arg0, %c0_i32_19 : i32
    %62 = arith.extui %61 : i1 to i32
    %c0_i32_20 = arith.constant 0 : i32
    %63 = arith.cmpi ne, %62, %c0_i32_20 : i32
    scf.if %63 {
      %c0_21 = arith.constant 0 : index
      %c0_22 = arith.constant 0 : index
      %64 = vector.load %arg4[%c0_21, %c0_22] : memref<1x1xf32, #tpu.memory_space<vmem>>, vector<1x1xf32>
      %65 = vector.extract %64[0, 0] : f32 from vector<1x1xf32>
      %cst_23 = arith.constant 2.000000e+00 : f32
      %66 = arith.divf %65, %cst_23 : f32
      %c0_24 = arith.constant 0 : index
      %c0_25 = arith.constant 0 : index
      %67 = memref.load %arg3[%c0_24, %c0_25] : memref<1x1xf32, #tpu.memory_space<smem>>
      memref.store %66, %arg3[%c0_24, %c0_25] : memref<1x1xf32, #tpu.memory_space<smem>>
    } else {
    }
    return
  }
  func.func @transform_0(%arg0: i32) -> (i32, i32) {
    %c0_i32 = arith.constant 0 : i32
    %c0_i32_0 = arith.constant 0 : i32
    return %arg0, %c0_i32 : i32, i32
  }
  func.func @transform_1(%arg0: i32) -> (i32, i32) {
    %c0_i32 = arith.constant 0 : i32
    %c0_i32_0 = arith.constant 0 : i32
    return %arg0, %c0_i32 : i32, i32
  }
  func.func @transform_2(%arg0: i32) -> (i32, i32) {
    %c0_i32 = arith.constant 0 : i32
    %c0_i32_0 = arith.constant 0 : i32
    %c0_i32_1 = arith.constant 0 : i32
    return %c0_i32, %c0_i32_0 : i32, i32
  }
}

</mosaic_0001>

<llo_original>
// kernel: tpu_custom_call.1
$region0: #{tpu_custom_call.1}
  #allocation0 [shape = 'u32[]', space=smem, size = 0x4, offset = 0x4, fixed_abs, tag = 'smem constant byte address 0x4 - core index']
  #allocation1 [shape = 'u32[144,128]{1,0:T(1,128)}', space=vmem, size = 0x12000, scoped, tag = 'internal scratch']
  #allocation2 [shape = 'f32[1,1]{1,0:T(1,128)}', space=vmem, size = 0x200, scoped, tag = 'scratch operand']
  %s0 = inlined_call_operand.hbm [shape: f32[2,1024], index: 0, kind: input, shape index: {}]
  %s1 = inlined_call_operand.hbm [shape: f32[2,1024], index: 1, kind: input, shape index: {}]
  %s2 = inlined_call_operand.hbm [shape: f32[1,1], index: 2, kind: output, shape index: {}]
  %s3 = sld [smem:[#allocation0]]
  $region34: #{tpu_custom_call.1} parent=0
    _
  %s5 = ssub.s32 1, %s3
  %s6 = scalar_select 0, %s5, %s3
  $region1: #{tpu_custom_call.1} parent=0
    #allocation3 [shape = 'u8[8192]{0}', space=vmem, size = 0x2000, scoped, tag = 'input window, operand 0, single buffered']
    #allocation4 [shape = 's32[1]{0}', space=sflag, size = 0x4, scoped, tag = 'scoped memory for tpu_custom_call.1']
    #allocation5 [shape = 's32[1]{0}', space=sflag, size = 0x4, scoped, tag = 'scoped memory for tpu_custom_call.1']
    #allocation6 [shape = 'u8[8192]{0}', space=vmem, size = 0x2000, scoped, tag = 'input window, operand 1, single buffered']
    #allocation7 [shape = 's32[1]{0}', space=sflag, size = 0x4, scoped, tag = 'scoped memory for tpu_custom_call.1']
    #allocation8 [shape = 'u8[512]{0}', space=smem, size = 0x200, scoped, tag = 'output window, operand 0, single buffered']
    %7 = vsyncpa [#allocation4], 0
    %8 = vsyncpa [#allocation7], 0
    %9 = vsyncpa [#allocation5], 0
    // Predicated region
    $region2: #{tpu_custom_call.1} parent=1 // pred_check
      _
    $region3: #{tpu_custom_call.1} parent=1 // pred_check_branch
      %11 = sbr.rel (0) target = $region5
    $region4: #{tpu_custom_call.1} parent=1 // pred_region
      %s13 = ssub.s32 256, 256
      %14 = vsyncadd [#allocation4], %s13
      %s16 = sshll.u32 [#allocation3], 4
      %s17 = int_to_ptr.vmem [resolvable:$true] %s16
      %19 = dma.hbm_to_vmem [thread:$0]  %s0, 256, %s17, [#allocation4]
    $region5: #{tpu_custom_call.1} parent=1 // pred_fallthru
      _
    // Predicated region
    $region6: #{tpu_custom_call.1} parent=1 // pred_check
      _
    $region7: #{tpu_custom_call.1} parent=1 // pred_check_branch
      %21 = sbr.rel (0) target = $region9
    $region8: #{tpu_custom_call.1} parent=1 // pred_region
      %s23 = ssub.s32 256, 256
      %24 = vsyncadd [#allocation7], %s23
      %s26 = sshll.u32 [#allocation6], 4
      %s27 = int_to_ptr.vmem [resolvable:$true] %s26
      %29 = dma.hbm_to_vmem [thread:$0]  %s1, 256, %s27, [#allocation7]
    $region9: #{tpu_custom_call.1} parent=1 // pred_fallthru
      _
    // Predicated region
    $region10: #{tpu_custom_call.1} parent=1 // pred_check
      _
    $region11: #{tpu_custom_call.1} parent=1 // pred_check_branch
      %31 = sbr.rel (0) target = $region13
    $region12: #{tpu_custom_call.1} parent=1 // pred_region
      %32 = dma.done [#allocation4], 256
    $region13: #{tpu_custom_call.1} parent=1 // pred_fallthru
      _
    // Predicated region
    $region14: #{tpu_custom_call.1} parent=1 // pred_check
      _
    $region15: #{tpu_custom_call.1} parent=1 // pred_check_branch
      %34 = sbr.rel (0) target = $region17
    $region16: #{tpu_custom_call.1} parent=1 // pred_region
      %35 = dma.done [#allocation7], 256
    $region17: #{tpu_custom_call.1} parent=1 // pred_fallthru
      _
    %p36 = scmp.eq.s32.totalorder 0, 0
    // Predicated region
    $region18: #{tpu_custom_call.1} parent=1 // pred_check
      %p37 = pneg %p36
    $region19: #{tpu_custom_call.1} parent=1 // pred_check_branch
      %39 = sbr.rel (%p37) target = $region21
    $region20: #{tpu_custom_call.1} parent=1 // pred_region
      %vm40 = vcmask 0
      %41 = vst.msk [vmem:[#allocation2] sm:$0x1] %vm40, 0.0
    $region21: #{tpu_custom_call.1} parent=1 // pred_fallthru
      _
    %v42 = vld [vmem:[#allocation3] sm:$0xff]
    %v43 = vld [vmem:[#allocation3 + $0x8] sm:$0xff]
    %v44 = vld [vmem:[#allocation6] sm:$0xff]
    %v45 = vld [vmem:[#allocation6 + $0x8] sm:$0xff]
    %v46 = vand.u32 2147483647, %v42
    %v47 = vand.u32 2147483647, %v43
    %v50 = vcombine.high %v46, %v46
    %v52 = vunpack.c.l.s4 1983009808
    %v53 = vunpack.c.0.s8 %v52
    %v54 = vlaneseq
    %v55 = vshrl.u32 %v54, 7
    %v56 = vsub.s32 %v53, %v55
    %v57 = vrot.slane %v46, %v56
    %v59 = vunpack.c.l.s4 1983009808
    %v60 = vunpack.c.0.s8 %v59
    %v61 = vlaneseq
    %v62 = vshrl.u32 %v61, 7
    %v63 = vsub.s32 %v60, %v62
    %v64 = vrot.slane %v50, %v63
    %v65 = vcombine.high %v57, %v57
    %v66 = vcombine.high %v64, %v64
    %v67 = vcombine.high %v47, %v47
    %v69 = vunpack.c.l.s4 1983009808
    %v70 = vunpack.c.0.s8 %v69
    %v71 = vlaneseq
    %v72 = vshrl.u32 %v71, 7
    %v73 = vsub.s32 %v70, %v72
    %v74 = vrot.slane %v47, %v73
    %v76 = vunpack.c.l.s4 1983009808
    %v77 = vunpack.c.0.s8 %v76
    %v78 = vlaneseq
    %v79 = vshrl.u32 %v78, 7
    %v80 = vsub.s32 %v77, %v79
    %v81 = vrot.slane %v67, %v80
    %v82 = vcombine.high %v74, %v74
    %v83 = vcombine.high %v81, %v81
    %vm92 = vcmask 1041408
    %v93 = vsel %vm92, %v57, 0.0
    %v94 = vsel %vm92, %v65, 0.0
    %v95 = vadd.f32 %v93, %v94
    %v96 = vsel %vm92, %v64, 0.0
    %v97 = vadd.f32 %v95, %v96
    %v98 = vsel %vm92, %v66, 0.0
    %v99 = vadd.f32 %v97, %v98
    %v100 = vsel %vm92, %v74, 0.0
    %v101 = vadd.f32 %v99, %v100
    %v102 = vsel %vm92, %v82, 0.0
    %v103 = vadd.f32 %v101, %v102
    %v104 = vsel %vm92, %v81, 0.0
    %v105 = vadd.f32 %v103, %v104
    %v106 = vsel %vm92, %v83, 0.0
    %v107 = vadd.f32 %v105, %v106
    %108 = vadd.xlane.f32.xlu0 %v107
    %v109 = vpop.xlane.xlu0 %108
    %v110 = vmax.f32 %v109, 1e-12
    %v113 = vunpack.c.l.s4 269488144
    %v114 = vunpack.c.0.s8 %v113
    %v115 = vlaneseq
    %v116 = vshrl.u32 %v115, 7
    %v117 = vsub.s32 %v114, %v116
    %v118 = vrot.slane %v110, %v117
    %v120 = vrcp.pop %v118
    %v121 = vmul.f32 %v42, %v120
    %v122 = vmul.f32 %v43, %v120
    %v123 = vand.u32 2147483647, %v44
    %v124 = vand.u32 2147483647, %v45
    %v127 = vcombine.high %v123, %v123
    %v129 = vunpack.c.l.s4 1983009808
    %v130 = vunpack.c.0.s8 %v129
    %v131 = vlaneseq
    %v132 = vshrl.u32 %v131, 7
    %v133 = vsub.s32 %v130, %v132
    %v134 = vrot.slane %v123, %v133
    %v136 = vunpack.c.l.s4 1983009808
    %v137 = vunpack.c.0.s8 %v136
    %v138 = vlaneseq
    %v139 = vshrl.u32 %v138, 7
    %v140 = vsub.s32 %v137, %v139
    %v141 = vrot.slane %v127, %v140
    %v142 = vcombine.high %v134, %v134
    %v143 = vcombine.high %v141, %v141
    %v144 = vcombine.high %v124, %v124
    %v146 = vunpack.c.l.s4 1983009808
    %v147 = vunpack.c.0.s8 %v146
    %v148 = vlaneseq
    %v149 = vshrl.u32 %v148, 7
    %v150 = vsub.s32 %v147, %v149
    %v151 = vrot.slane %v124, %v150
    %v153 = vunpack.c.l.s4 1983009808
    %v154 = vunpack.c.0.s8 %v153
    %v155 = vlaneseq
    %v156 = vshrl.u32 %v155, 7
    %v157 = vsub.s32 %v154, %v156
    %v158 = vrot.slane %v144, %v157
    %v159 = vcombine.high %v151, %v151
    %v160 = vcombine.high %v158, %v158
    %v169 = vsel %vm92, %v134, 0.0
    %v170 = vsel %vm92, %v142, 0.0
    %v171 = vadd.f32 %v169, %v170
    %v172 = vsel %vm92, %v141, 0.0
    %v173 = vadd.f32 %v171, %v172
    %v174 = vsel %vm92, %v143, 0.0
    %v175 = vadd.f32 %v173, %v174
    %v176 = vsel %vm92, %v151, 0.0
    %v177 = vadd.f32 %v175, %v176
    %v178 = vsel %vm92, %v159, 0.0
    %v179 = vadd.f32 %v177, %v178
    %v180 = vsel %vm92, %v158, 0.0
    %v181 = vadd.f32 %v179, %v180
    %v182 = vsel %vm92, %v160, 0.0
    %v183 = vadd.f32 %v181, %v182
    %184 = vadd.xlane.f32.xlu0 %v183
    %v185 = vpop.xlane.xlu0 %184
    %v186 = vmax.f32 %v185, 1e-12
    %v189 = vunpack.c.l.s4 269488144
    %v190 = vunpack.c.0.s8 %v189
    %v191 = vlaneseq
    %v192 = vshrl.u32 %v191, 7
    %v193 = vsub.s32 %v190, %v192
    %v194 = vrot.slane %v186, %v193
    %v196 = vrcp.pop %v194
    %v197 = vmul.f32 %v44, %v196
    %v198 = vmul.f32 %v45, %v196
    %v201 = vcombine.high %v121, %v121
    %v203 = vunpack.c.l.s4 1983009808
    %v204 = vunpack.c.0.s8 %v203
    %v205 = vlaneseq
    %v206 = vshrl.u32 %v205, 7
    %v207 = vsub.s32 %v204, %v206
    %v208 = vrot.slane %v121, %v207
    %v210 = vunpack.c.l.s4 1983009808
    %v211 = vunpack.c.0.s8 %v210
    %v212 = vlaneseq
    %v213 = vshrl.u32 %v212, 7
    %v214 = vsub.s32 %v211, %v213
    %v215 = vrot.slane %v201, %v214
    %v216 = vcombine.high %v208, %v208
    %v217 = vcombine.high %v215, %v215
    %v218 = vcombine.high %v122, %v122
    %v220 = vunpack.c.l.s4 1983009808
    %v221 = vunpack.c.0.s8 %v220
    %v222 = vlaneseq
    %v223 = vshrl.u32 %v222, 7
    %v224 = vsub.s32 %v221, %v223
    %v225 = vrot.slane %v122, %v224
    %v227 = vunpack.c.l.s4 1983009808
    %v228 = vunpack.c.0.s8 %v227
    %v229 = vlaneseq
    %v230 = vshrl.u32 %v229, 7
    %v231 = vsub.s32 %v228, %v230
    %v232 = vrot.slane %v218, %v231
    %v233 = vcombine.high %v225, %v225
    %v234 = vcombine.high %v232, %v232
    %v243 = vsel %vm92, %v208, -inf
    %v244 = vsel %vm92, %v216, -inf
    %v245 = vsel %vm92, %v215, -inf
    %v246 = vsel %vm92, %v217, -inf
    %v247 = vsel %vm92, %v225, -inf
    %v248 = vmax.f32 %v243, %v247
    %v249 = vsel %vm92, %v233, -inf
    %v250 = vmax.f32 %v244, %v249
    %v251 = vsel %vm92, %v232, -inf
    %v252 = vmax.f32 %v245, %v251
    %v253 = vsel %vm92, %v234, -inf
    %v254 = vmax.f32 %v246, %v253
    %v255 = vmax.f32 %v248, %v250
    %v256 = vmax.f32 %v252, %v254
    %v257 = vmax.f32 %v255, %v256
    %258 = vmax.xlane.f32.xlu0 %v257
    %v259 = vpop.xlane.xlu0 %258
    %v262 = vunpack.c.l.s4 269488144
    %v263 = vunpack.c.0.s8 %v262
    %v264 = vlaneseq
    %v265 = vshrl.u32 %v264, 7
    %v266 = vsub.s32 %v263, %v265
    %v267 = vrot.slane %v259, %v266
    %v269 = vsub.f32 %v121, %v267
    %v270 = vsub.f32 %v122, %v267
    %v271 = vmul.f32 %v269, 1.442695
    %v272 = vpow.pop %v271
    %v273 = vmul.f32 %v270, 1.442695
    %v274 = vpow.pop %v273
    %v277 = vcombine.high %v272, %v272
    %v279 = vunpack.c.l.s4 1983009808
    %v280 = vunpack.c.0.s8 %v279
    %v281 = vlaneseq
    %v282 = vshrl.u32 %v281, 7
    %v283 = vsub.s32 %v280, %v282
    %v284 = vrot.slane %v272, %v283
    %v286 = vunpack.c.l.s4 1983009808
    %v287 = vunpack.c.0.s8 %v286
    %v288 = vlaneseq
    %v289 = vshrl.u32 %v288, 7
    %v290 = vsub.s32 %v287, %v289
    %v291 = vrot.slane %v277, %v290
    %v292 = vcombine.high %v284, %v284
    %v293 = vcombine.high %v291, %v291
    %v294 = vcombine.high %v274, %v274
    %v296 = vunpack.c.l.s4 1983009808
    %v297 = vunpack.c.0.s8 %v296
    %v298 = vlaneseq
    %v299 = vshrl.u32 %v298, 7
    %v300 = vsub.s32 %v297, %v299
    %v301 = vrot.slane %v274, %v300
    %v303 = vunpack.c.l.s4 1983009808
    %v304 = vunpack.c.0.s8 %v303
    %v305 = vlaneseq
    %v306 = vshrl.u32 %v305, 7
    %v307 = vsub.s32 %v304, %v306
    %v308 = vrot.slane %v294, %v307
    %v309 = vcombine.high %v301, %v301
    %v310 = vcombine.high %v308, %v308
    %v319 = vsel %vm92, %v284, 0.0
    %v320 = vsel %vm92, %v292, 0.0
    %v321 = vadd.f32 %v319, %v320
    %v322 = vsel %vm92, %v291, 0.0
    %v323 = vadd.f32 %v321, %v322
    %v324 = vsel %vm92, %v293, 0.0
    %v325 = vadd.f32 %v323, %v324
    %v326 = vsel %vm92, %v301, 0.0
    %v327 = vadd.f32 %v325, %v326
    %v328 = vsel %vm92, %v309, 0.0
    %v329 = vadd.f32 %v327, %v328
    %v330 = vsel %vm92, %v308, 0.0
    %v331 = vadd.f32 %v329, %v330
    %v332 = vsel %vm92, %v310, 0.0
    %v333 = vadd.f32 %v331, %v332
    %334 = vadd.xlane.f32.xlu0 %v333
    %v335 = vpop.xlane.xlu0 %334
    %v336 = vlog2.pop %v335
    %v337 = vmul.f32 %v336, 0.6931472
    %v340 = vunpack.c.l.s4 269488144
    %v341 = vunpack.c.0.s8 %v340
    %v342 = vlaneseq
    %v343 = vshrl.u32 %v342, 7
    %v344 = vsub.s32 %v341, %v343
    %v345 = vrot.slane %v337, %v344
    %v347 = vsub.f32 %v269, %v345
    %v348 = vsub.f32 %v270, %v345
    %v351 = vcombine.high %v197, %v197
    %v353 = vunpack.c.l.s4 1983009808
    %v354 = vunpack.c.0.s8 %v353
    %v355 = vlaneseq
    %v356 = vshrl.u32 %v355, 7
    %v357 = vsub.s32 %v354, %v356
    %v358 = vrot.slane %v197, %v357
    %v360 = vunpack.c.l.s4 1983009808
    %v361 = vunpack.c.0.s8 %v360
    %v362 = vlaneseq
    %v363 = vshrl.u32 %v362, 7
    %v364 = vsub.s32 %v361, %v363
    %v365 = vrot.slane %v351, %v364
    %v366 = vcombine.high %v358, %v358
    %v367 = vcombine.high %v365, %v365
    %v368 = vcombine.high %v198, %v198
    %v370 = vunpack.c.l.s4 1983009808
    %v371 = vunpack.c.0.s8 %v370
    %v372 = vlaneseq
    %v373 = vshrl.u32 %v372, 7
    %v374 = vsub.s32 %v371, %v373
    %v375 = vrot.slane %v198, %v374
    %v377 = vunpack.c.l.s4 1983009808
    %v378 = vunpack.c.0.s8 %v377
    %v379 = vlaneseq
    %v380 = vshrl.u32 %v379, 7
    %v381 = vsub.s32 %v378, %v380
    %v382 = vrot.slane %v368, %v381
    %v383 = vcombine.high %v375, %v375
    %v384 = vcombine.high %v382, %v382
    %v393 = vsel %vm92, %v358, -inf
    %v394 = vsel %vm92, %v366, -inf
    %v395 = vsel %vm92, %v365, -inf
    %v396 = vsel %vm92, %v367, -inf
    %v397 = vsel %vm92, %v375, -inf
    %v398 = vmax.f32 %v393, %v397
    %v399 = vsel %vm92, %v383, -inf
    %v400 = vmax.f32 %v394, %v399
    %v401 = vsel %vm92, %v382, -inf
    %v402 = vmax.f32 %v395, %v401
    %v403 = vsel %vm92, %v384, -inf
    %v404 = vmax.f32 %v396, %v403
    %v405 = vmax.f32 %v398, %v400
    %v406 = vmax.f32 %v402, %v404
    %v407 = vmax.f32 %v405, %v406
    %408 = vmax.xlane.f32.xlu0 %v407
    %v409 = vpop.xlane.xlu0 %408
    %v412 = vunpack.c.l.s4 269488144
    %v413 = vunpack.c.0.s8 %v412
    %v414 = vlaneseq
    %v415 = vshrl.u32 %v414, 7
    %v416 = vsub.s32 %v413, %v415
    %v417 = vrot.slane %v409, %v416
    %v419 = vsub.f32 %v197, %v417
    %v420 = vsub.f32 %v198, %v417
    %v421 = vmul.f32 %v419, 1.442695
    %v422 = vpow.pop %v421
    %v423 = vmul.f32 %v420, 1.442695
    %v424 = vpow.pop %v423
    %v427 = vcombine.high %v422, %v422
    %v429 = vunpack.c.l.s4 1983009808
    %v430 = vunpack.c.0.s8 %v429
    %v431 = vlaneseq
    %v432 = vshrl.u32 %v431, 7
    %v433 = vsub.s32 %v430, %v432
    %v434 = vrot.slane %v422, %v433
    %v436 = vunpack.c.l.s4 1983009808
    %v437 = vunpack.c.0.s8 %v436
    %v438 = vlaneseq
    %v439 = vshrl.u32 %v438, 7
    %v440 = vsub.s32 %v437, %v439
    %v441 = vrot.slane %v427, %v440
    %v442 = vcombine.high %v434, %v434
    %v443 = vcombine.high %v441, %v441
    %v444 = vcombine.high %v424, %v424
    %v446 = vunpack.c.l.s4 1983009808
    %v447 = vunpack.c.0.s8 %v446
    %v448 = vlaneseq
    %v449 = vshrl.u32 %v448, 7
    %v450 = vsub.s32 %v447, %v449
    %v451 = vrot.slane %v424, %v450
    %v453 = vunpack.c.l.s4 1983009808
    %v454 = vunpack.c.0.s8 %v453
    %v455 = vlaneseq
    %v456 = vshrl.u32 %v455, 7
    %v457 = vsub.s32 %v454, %v456
    %v458 = vrot.slane %v444, %v457
    %v459 = vcombine.high %v451, %v451
    %v460 = vcombine.high %v458, %v458
    %v469 = vsel %vm92, %v434, 0.0
    %v470 = vsel %vm92, %v442, 0.0
    %v471 = vadd.f32 %v469, %v470
    %v472 = vsel %vm92, %v441, 0.0
    %v473 = vadd.f32 %v471, %v472
    %v474 = vsel %vm92, %v443, 0.0
    %v475 = vadd.f32 %v473, %v474
    %v476 = vsel %vm92, %v451, 0.0
    %v477 = vadd.f32 %v475, %v476
    %v478 = vsel %vm92, %v459, 0.0
    %v479 = vadd.f32 %v477, %v478
    %v480 = vsel %vm92, %v458, 0.0
    %v481 = vadd.f32 %v479, %v480
    %v482 = vsel %vm92, %v460, 0.0
    %v483 = vadd.f32 %v481, %v482
    %484 = vadd.xlane.f32.xlu0 %v483
    %v485 = vpop.xlane.xlu0 %484
    %v486 = vlog2.pop %v485
    %v487 = vmul.f32 %v486, 0.6931472
    %v490 = vunpack.c.l.s4 269488144
    %v491 = vunpack.c.0.s8 %v490
    %v492 = vlaneseq
    %v493 = vshrl.u32 %v492, 7
    %v494 = vsub.s32 %v491, %v493
    %v495 = vrot.slane %v487, %v494
    %v497 = vsub.f32 %v419, %v495
    %v498 = vsub.f32 %v420, %v495
    %v499 = vmul.f32 %v347, 1.442695
    %v500 = vpow.pop %v499
    %v501 = vmul.f32 %v348, 1.442695
    %v502 = vpow.pop %v501
    %v503 = vsub.f32 %v347, %v497
    %v504 = vsub.f32 %v348, %v498
    %v505 = vmul.f32 %v500, %v503
    %v506 = vmul.f32 %v502, %v504
    %v509 = vcombine.high %v505, %v505
    %v511 = vunpack.c.l.s4 1983009808
    %v512 = vunpack.c.0.s8 %v511
    %v513 = vlaneseq
    %v514 = vshrl.u32 %v513, 7
    %v515 = vsub.s32 %v512, %v514
    %v516 = vrot.slane %v505, %v515
    %v518 = vunpack.c.l.s4 1983009808
    %v519 = vunpack.c.0.s8 %v518
    %v520 = vlaneseq
    %v521 = vshrl.u32 %v520, 7
    %v522 = vsub.s32 %v519, %v521
    %v523 = vrot.slane %v509, %v522
    %v524 = vcombine.high %v516, %v516
    %v525 = vcombine.high %v523, %v523
    %v526 = vcombine.high %v506, %v506
    %v528 = vunpack.c.l.s4 1983009808
    %v529 = vunpack.c.0.s8 %v528
    %v530 = vlaneseq
    %v531 = vshrl.u32 %v530, 7
    %v532 = vsub.s32 %v529, %v531
    %v533 = vrot.slane %v506, %v532
    %v535 = vunpack.c.l.s4 1983009808
    %v536 = vunpack.c.0.s8 %v535
    %v537 = vlaneseq
    %v538 = vshrl.u32 %v537, 7
    %v539 = vsub.s32 %v536, %v538
    %v540 = vrot.slane %v526, %v539
    %v541 = vcombine.high %v533, %v533
    %v542 = vcombine.high %v540, %v540
    %v551 = vsel %vm92, %v516, 0.0
    %v552 = vsel %vm92, %v524, 0.0
    %v553 = vadd.f32 %v551, %v552
    %v554 = vsel %vm92, %v523, 0.0
    %v555 = vadd.f32 %v553, %v554
    %v556 = vsel %vm92, %v525, 0.0
    %v557 = vadd.f32 %v555, %v556
    %v558 = vsel %vm92, %v533, 0.0
    %v559 = vadd.f32 %v557, %v558
    %v560 = vsel %vm92, %v541, 0.0
    %v561 = vadd.f32 %v559, %v560
    %v562 = vsel %vm92, %v540, 0.0
    %v563 = vadd.f32 %v561, %v562
    %v564 = vsel %vm92, %v542, 0.0
    %v565 = vadd.f32 %v563, %v564
    %566 = vadd.xlane.f32.xlu0 %v565
    %v567 = vpop.xlane.xlu0 %566
    %s568 = smul.u32 0, 2
    %v569 = vlaneseq
    %v570 = vshrl.u32 %v569, 7
    %v571 = vstv %s568
    %v572 = vadd.s32 %v571, %v570
    %vm573 = vcmp.lt.s32.totalorder %v572, 2
    %v574 = vsel %vm573, %v567, 0.0
    %v575 = vld [vmem:[#allocation2] sm:$0x1]
    %v576 = vsel %vm92, %v574, 0.0
    %v577 = vrot.slane %v576, 4
    %v578 = vadd.f32 %v576, %v577
    %v579 = vrot.slane %v578, 2
    %v580 = vadd.f32 %v578, %v579
    %v581 = vrot.slane %v580, 1
    %v582 = vadd.f32 %v580, %v581
    %v583 = vadd.f32 %v575, %v582
    %vm584 = vcmask 0
    %585 = vst.msk [vmem:[#allocation2] sm:$0x1] %vm584, %v583
    // Predicated region
    $region22: #{tpu_custom_call.1} parent=1 // pred_check
      %p586 = pneg %p36
    $region23: #{tpu_custom_call.1} parent=1 // pred_check_branch
      %588 = sbr.rel (%p586) target = $region25
    $region24: #{tpu_custom_call.1} parent=1 // pred_region
      %v589 = vld [vmem:[#allocation2] sm:$0x1]
      %s590 = vtos %v589
      %v591 = vrcp.pop 2.0
      %s592 = vtos %v591
      %s593 = smul.f32 %s590, %s592
      %s594 = scalar_lea.smem [#allocation8], 0
      %595 = sst [smem:[%s594]] %s593
    $region25: #{tpu_custom_call.1} parent=1 // pred_fallthru
      _
    // Predicated region
    $region26: #{tpu_custom_call.1} parent=1 // pred_check
      _
    $region27: #{tpu_custom_call.1} parent=1 // pred_check_branch
      %597 = sbr.rel (0) target = $region29
    $region28: #{tpu_custom_call.1} parent=1 // pred_region
      %s599 = ssub.s32 16, 16
      %600 = vsyncadd [#allocation5], %s599
      %603 = dma.smem_to_hbm [#allocation8], 16, %s2, [#allocation5]
    $region29: #{tpu_custom_call.1} parent=1 // pred_fallthru
      _
    // Predicated region
    $region30: #{tpu_custom_call.1} parent=1 // pred_check
      _
    $region31: #{tpu_custom_call.1} parent=1 // pred_check_branch
      %605 = sbr.rel (0) target = $region33
    $region32: #{tpu_custom_call.1} parent=1 // pred_region
      %606 = dma.done [#allocation5], 16
    $region33: #{tpu_custom_call.1} parent=1 // pred_fallthru
      _
    %607 = sfence
    %608 = vsyncpa [#allocation4], 1
    %609 = vsyncpa [#allocation7], 1
    %610 = vsyncpa [#allocation5], 1

</llo_original>
